<compile_context>
chip_gen: v7x
topology: tpu7x:2x2x1
jax: 0.10.0
libtpu: 0.0.40
codegen_flags: <defaults>
</compile_context>

<pallas_src>
import functools
import math

import jax
import jax.numpy as jnp
from jax import lax
from jax.experimental import pallas as pl
from jax.experimental.pallas import tpu as pltpu


def _bce_neg_sampling_kernel(d_ref, o_ref, *, negative_weight, margin, fast_math):
    kp1, _ = d_ref.shape
    d = d_ref[...].astype(jnp.float32)                          # (1+K, tb), full-block load
    is_pos = lax.broadcasted_iota(jnp.int32, d.shape, 0) == 0   # row 0 = positive

    if fast_math:
        # Opt-in (requires 0 <= distance <~ 80): reuse the softmax exponential
        # for both logsigmoid terms, no max-shift.  2 EUP pushes / element.
        #   row 0 : pos_loss = log(1 + e * exp(-margin)),  e = exp(-pos)
        #   row>0 : neg_loss = log(e + exp(+margin)) + neg, e = exp(-neg)
        e = jnp.exp(-d)                                          # EUP push #1
        arg = jnp.where(is_pos, 1.0 + e * math.exp(-margin), e + math.exp(margin))
        sp = jnp.log(arg) + jnp.where(is_pos, 0.0, d)            # EUP push #2
        ew = jnp.where(is_pos, 0.0, e)                           # unshifted softmax numerators
    else:
        # Safe default: one softplus over the whole block via a per-row sign,
        # then a max-shifted softmax (no overflow for any finite input).
        x = jnp.where(is_pos, -(d + margin), d + margin)
        sp = jnp.maximum(x, 0.0) + jnp.log1p(jnp.exp(-jnp.abs(x)))
        a = jnp.where(is_pos, -jnp.inf, -d)
        m = jnp.max(a, axis=0, keepdims=True)                    # (1, tb) cross-sublane max
        ew = jnp.where(is_pos, 0.0, jnp.exp(a - m))

    denom = jnp.sum(ew, axis=0, keepdims=True)                   # (1, tb)
    num = jnp.sum(ew * sp, axis=0, keepdims=True)                # (1, tb)
    r = pl.reciprocal(denom, approx=True)                        # fast EUP vrcp
    r = r * (2.0 - denom * r)                                    # one Newton step -> ~f32 exact
    weighted_neg = num * r

    pos_loss = sp[0:1, :]                                        # offset-0 slice (no tile crossing)
    out = (1.0 - negative_weight) * pos_loss + negative_weight * weighted_neg
    o_ref[...] = out.astype(o_ref.dtype)                         # lane-dense (1, tb) store


def _round_up(x, m):
    return ((x + m - 1) // m) * m


def _tensorcores_per_chip():
    """2 for dual-TensorCore / megacore chips (v4, v5p, v7x); 1 otherwise."""
    try:
        kind = jax.devices()[0].device_kind.lower()
    except Exception:
        return 1
    if "lite" in kind or "v5e" in kind or "v6" in kind:
        return 1
    if "v7" in kind or "v5p" in kind or "v4" in kind:
        return 2
    return 1


def _choose_lane_tile(b, block_lanes, num_cores):
    cap = max(128, (int(block_lanes) // 128) * 128)
    tb = b if b <= cap else cap                  # full-extent block, or multiple-of-128 cap
    if num_cores >= 2 and b >= 2 * 128:
        # Dual-TC chips: force >= 2 programs (even count) so the "parallel"
        # lane axis shards across both TensorCores.
        n_target = max(2, -(-b // cap))
        if n_target % 2:
            n_target += 1
        tb = min(cap, max(128, _round_up(-(-b // n_target), 128)))
    return tb


def bce_with_distances_negative_sampling_loss_from_transposed(
    distance_t,
    negative_weight: float = 0.5,
    margin: float = 1.0,
    *,
    block_lanes: int = 32768,
    fast_math: bool = False,
):
    """Zero-copy entry point: distance_t is (1+K, B) lane-dense -> loss (B,)."""
    kp1, b = distance_t.shape
    out_dtype = distance_t.dtype

    tb = _choose_lane_tile(b, block_lanes, _tensorcores_per_chip())
    grid = (pl.cdiv(b, tb),)

    kernel = functools.partial(
        _bce_neg_sampling_kernel,
        negative_weight=float(negative_weight),
        margin=float(margin),
        fast_math=bool(fast_math),
    )

    out = pl.pallas_call(
        kernel,
        out_shape=jax.ShapeDtypeStruct((1, b), out_dtype),
        grid_spec=pltpu.PrefetchScalarGridSpec(
            num_scalar_prefetch=0,
            grid=grid,
            in_specs=[pl.BlockSpec((kp1, tb), lambda i: (0, i))],
            out_specs=pl.BlockSpec((1, tb), lambda i: (0, i)),
        ),
        compiler_params=pltpu.CompilerParams(
            dimension_semantics=("parallel",),
            vmem_limit_bytes=32 * 1024 * 1024,
        ),
    )(distance_t)
    return out[0]


def bce_with_distances_negative_sampling_loss(
    distance,
    negative_weight: float = 0.5,
    margin: float = 1.0,
    *,
    block_lanes: int = 32768,
    fast_math: bool = False,
):
    """distance: (..., 1+K) -> loss: (...)  (matches the PyTorch module)."""
    orig_shape = distance.shape
    kp1 = int(orig_shape[-1])
    lead = orig_shape[:-1]
    b = 1
    for s in lead:
        b *= int(s)
    out_dtype = distance.dtype

    if kp1 < 2 or b == 0:
        # No negatives: softmax over an empty set -> negative term contributes 0.
        # TODO(synk): degenerate K=0 / empty-batch cases handled with plain JAX.
        if kp1 >= 1:
            pos = distance[..., 0].astype(jnp.float32)
        else:
            pos = jnp.zeros(lead, jnp.float32)
        tp = -(pos + margin)
        pos_loss = jnp.maximum(tp, 0.0) + jnp.log1p(jnp.exp(-jnp.abs(tp)))
        return ((1.0 - negative_weight) * pos_loss).astype(out_dtype).reshape(lead)

    # TODO(synk): this transpose is a full extra HBM round-trip; producers that
    # can emit scores directly in (1+K, B) layout (e.g. via the scoring matmul's
    # output layout, or by fusing inside the same jit) should call
    # bce_with_distances_negative_sampling_loss_from_transposed() instead.
    d_t = distance.reshape(b, kp1).T
    out = bce_with_distances_negative_sampling_loss_from_transposed(
        d_t, negative_weight, margin, block_lanes=block_lanes, fast_math=fast_math
    )
    return out.reshape(lead)


def _reference(distance, negative_weight=0.5, margin=1.0):
    d = distance.astype(jnp.float32)
    pos = d[..., 0]
    neg = d[..., 1:]
    pos_loss = -jax.nn.log_sigmoid(margin + pos)
    neg_loss = -jax.nn.log_sigmoid(-neg - margin)
    weights = jax.nn.softmax(-neg, axis=-1)
    wan = jnp.sum(weights * neg_loss, axis=-1)
    return (1.0 - negative_weight) * pos_loss + negative_weight * wan


if __name__ == "__main__":
    key = jax.random.PRNGKey(0)
    k1, k2, k3 = jax.random.split(key, 3)

    # Case 1: (2, 128, 9) -> B = 256; block_lanes=128 exercises a multi-step grid
    # (and the dual-TensorCore split on v4/v5p/v7x).
    d1 = jax.random.uniform(k1, (2, 128, 9), dtype=jnp.float32) * 4.0
    out1 = jax.block_until_ready(
        bce_with_distances_negative_sampling_loss(d1, 0.5, 1.0, block_lanes=128)
    )
    ref1 = _reference(d1, 0.5, 1.0)
    assert out1.shape == ref1.shape == (2, 128)
    assert float(jnp.max(jnp.abs(out1 - ref1))) < 2e-5

    # Case 2: ragged batch (B = 201, signed distances) exercises the partial
    # edge block and the safe (max-shifted) path.
    d2 = jax.random.normal(k2, (3, 67, 9), dtype=jnp.float32) * 2.0 + 1.0
    out2 = jax.block_until_ready(
        bce_with_distances_negative_sampling_loss(d2, 0.3, 0.5, block_lanes=128)
    )
    ref2 = _reference(d2, 0.3, 0.5)
    assert out2.shape == ref2.shape == (3, 67)
    assert float(jnp.max(jnp.abs(out2 - ref2))) < 2e-5

    # Case 3: fast_math opt-in (distances in [0, 4)) -- 2 EUP pushes / element.
    out3 = jax.block_until_ready(
        bce_with_distances_negative_sampling_loss(d1, 0.5, 1.0, fast_math=True)
    )
    assert float(jnp.max(jnp.abs(out3 - ref1))) < 5e-5

    # Case 4: bf16 input (halves HBM read traffic); kernel computes in f32.
    d4 = (jax.random.uniform(k3, (2, 64, 5), dtype=jnp.float32) * 4.0).astype(jnp.bfloat16)
    out4 = jax.block_until_ready(
        bce_with_distances_negative_sampling_loss(d4, 0.4, 1.0)
    )
    ref4 = _reference(d4, 0.4, 1.0)
    assert out4.shape == (2, 64) and out4.dtype == jnp.bfloat16
    assert float(jnp.max(jnp.abs(out4.astype(jnp.float32) - ref4))) < 3e-2

    # Case 5: zero-copy transposed entry point ((1+K, B) layout, no wrapper transpose).
    d5_t = d2.reshape(-1, 9).T
    out5 = jax.block_until_ready(
        bce_with_distances_negative_sampling_loss_from_transposed(d5_t, 0.3, 0.5)
    )
    assert float(jnp.max(jnp.abs(out5 - ref2.reshape(-1)))) < 2e-5

    print("KERNEL_OK")
</pallas_src>

<mosaic_0001>
module attributes {stable_mosaic.version = 11 : i64} {
  func.func @_bce_neg_sampling_kernel(%arg0: i32, %arg1: memref<9x128xf32, #tpu.memory_space<vmem>>, %arg2: memref<1x128xf32, #tpu.memory_space<vmem>>) attributes {dimension_semantics = [#tpu.dimension_semantics<parallel>], iteration_bounds = array<i64: 2>, scalar_prefetch = 0 : i64, scratch_operands = 0 : i64, tpu.core_type = #tpu.core_type<tc>, window_params = [{transform_indices = @transform_0, window_bounds = array<i64: 9, 128>}, {transform_indices = @transform_1, window_bounds = array<i64: 1, 128>}]} {
    %c0 = arith.constant 0 : index
    %c0_0 = arith.constant 0 : index
    %0 = vector.load %arg1[%c0, %c0_0] : memref<9x128xf32, #tpu.memory_space<vmem>>, vector<9x128xf32>
    %1 = tpu.iota {dimensions = array<i32: 0>} : vector<9x128xi32>
    %c0_i32 = arith.constant 0 : i32
    %2 = vector.broadcast %c0_i32 : i32 to vector<9x128xi32>
    %3 = arith.cmpi eq, %1, %2 : vector<9x128xi32>
    %cst = arith.constant 1.000000e+00 : f32
    %4 = vector.broadcast %cst : f32 to vector<9x128xf32>
    %5 = arith.addf %0, %4 : vector<9x128xf32>
    %cst_1 = arith.constant 0.000000e+00 : f32
    %6 = vector.broadcast %cst_1 : f32 to vector<9x128xf32>
    %7 = arith.subf %6, %5 : vector<9x128xf32>
    %cst_2 = arith.constant 1.000000e+00 : f32
    %8 = vector.broadcast %cst_2 : f32 to vector<9x128xf32>
    %9 = arith.addf %0, %8 : vector<9x128xf32>
    %10 = arith.select %3, %7, %9 : vector<9x128xi1>, vector<9x128xf32>
    %cst_3 = arith.constant 0.000000e+00 : f32
    %11 = vector.broadcast %cst_3 : f32 to vector<9x128xf32>
    %12 = arith.maximumf %10, %11 : vector<9x128xf32>
    %13 = math.absf %10 : vector<9x128xf32>
    %cst_4 = arith.constant 0.000000e+00 : f32
    %14 = vector.broadcast %cst_4 : f32 to vector<9x128xf32>
    %15 = arith.subf %14, %13 : vector<9x128xf32>
    %16 = math.exp %15 : vector<9x128xf32>
    %17 = math.log1p %16 : vector<9x128xf32>
    %18 = arith.addf %12, %17 : vector<9x128xf32>
    %cst_5 = arith.constant 0.000000e+00 : f32
    %19 = vector.broadcast %cst_5 : f32 to vector<9x128xf32>
    %20 = arith.subf %19, %0 : vector<9x128xf32>
    %cst_6 = arith.constant 0xFF800000 : f32
    %21 = vector.broadcast %cst_6 : f32 to vector<9x128xf32>
    %22 = arith.select %3, %21, %20 : vector<9x128xi1>, vector<9x128xf32>
    %cst_7 = arith.constant dense<0xFF800000> : vector<128xf32>
    %23 = vector.multi_reduction <maximumf>, %22, %cst_7 [0] : vector<9x128xf32> to vector<128xf32>
    %24 = vector.shape_cast %23 : vector<128xf32> to vector<1x128xf32>
    %25 = vector.broadcast %24 : vector<1x128xf32> to vector<9x128xf32>
    %26 = arith.subf %22, %25 : vector<9x128xf32>
    %27 = math.exp %26 : vector<9x128xf32>
    %cst_8 = arith.constant 0.000000e+00 : f32
    %28 = vector.broadcast %cst_8 : f32 to vector<9x128xf32>
    %29 = arith.select %3, %28, %27 : vector<9x128xi1>, vector<9x128xf32>
    %cst_9 = arith.constant dense<0.000000e+00> : vector<128xf32>
    %30 = vector.multi_reduction <add>, %29, %cst_9 [0] : vector<9x128xf32> to vector<128xf32>
    %31 = vector.shape_cast %30 : vector<128xf32> to vector<1x128xf32>
    %32 = arith.mulf %29, %18 : vector<9x128xf32>
    %cst_10 = arith.constant dense<0.000000e+00> : vector<128xf32>
    %33 = vector.multi_reduction <add>, %32, %cst_10 [0] : vector<9x128xf32> to vector<128xf32>
    %34 = vector.shape_cast %33 : vector<128xf32> to vector<1x128xf32>
    %35 = tpu.reciprocal %31 {approx = true} : vector<1x128xf32> -> vector<1x128xf32>
    %36 = arith.mulf %31, %35 : vector<1x128xf32>
    %cst_11 = arith.constant 2.000000e+00 : f32
    %37 = vector.broadcast %cst_11 : f32 to vector<1x128xf32>
    %38 = arith.subf %37, %36 : vector<1x128xf32>
    %39 = arith.mulf %35, %38 : vector<1x128xf32>
    %40 = arith.mulf %34, %39 : vector<1x128xf32>
    %41 = vector.extract_strided_slice %18 {offsets = [0, 0], sizes = [1, 128], strides = [1, 1]} : vector<9x128xf32> to vector<1x128xf32>
    %cst_12 = arith.constant 5.000000e-01 : f32
    %42 = vector.broadcast %cst_12 : f32 to vector<1x128xf32>
    %43 = arith.mulf %42, %41 : vector<1x128xf32>
    %cst_13 = arith.constant 5.000000e-01 : f32
    %44 = vector.broadcast %cst_13 : f32 to vector<1x128xf32>
    %45 = arith.mulf %44, %40 : vector<1x128xf32>
    %46 = arith.addf %43, %45 : vector<1x128xf32>
    %c0_14 = arith.constant 0 : index
    %c0_15 = arith.constant 0 : index
    %47 = vector.load %arg2[%c0_14, %c0_15] : memref<1x128xf32, #tpu.memory_space<vmem>>, vector<1x128xf32>
    tpu.vector_store %arg2[%c0_14, %c0_15], %46 {strides = array<i32>} : memref<1x128xf32, #tpu.memory_space<vmem>>, vector<1x128xf32>,
    return
  }
  func.func @transform_0(%arg0: i32) -> (i32, i32) {
    %c0_i32 = arith.constant 0 : i32
    %c0_i32_0 = arith.constant 0 : i32
    return %c0_i32, %arg0 : i32, i32
  }
  func.func @transform_1(%arg0: i32) -> (i32, i32) {
    %c0_i32 = arith.constant 0 : i32
    %c0_i32_0 = arith.constant 0 : i32
    return %c0_i32, %arg0 : i32, i32
  }
}

</mosaic_0001>

<llo_original>
// kernel: tpu_custom_call.1
$region0: #{tpu_custom_call.1}
  #allocation0 [shape = 'u32[]', space=smem, size = 0x4, offset = 0x4, fixed_abs, tag = 'smem constant byte address 0x4 - core index']
  #allocation1 [shape = 'u32[144,128]{1,0:T(1,128)}', space=vmem, size = 0x12000, scoped, tag = 'internal scratch']
  %s0 = inlined_call_operand.hbm [shape: f32[9,256], index: 0, kind: input, shape index: {}]
  %s1 = inlined_call_operand.hbm [shape: f32[1,256], index: 1, kind: output, shape index: {}]
  %s2 = sld [smem:[#allocation0]]
  $region41: #{tpu_custom_call.1} parent=0
    _
  %s4 = ssub.s32 1, %s2
  %s5 = scalar_select 0, %s4, %s2
  $region1: #{tpu_custom_call.1} parent=0
    #allocation2 [shape = 'u8[16384]{0}', space=vmem, size = 0x4000, scoped, tag = 'input window, operand 0']
    #allocation3 [shape = 's32[2]{0}', space=sflag, size = 0x8, scoped, tag = 'scoped memory for tpu_custom_call.1']
    #allocation4 [shape = 's32[2]{0}', space=sflag, size = 0x8, scoped, tag = 'scoped memory for tpu_custom_call.1']
    #allocation5 [shape = 'u8[1024]{0}', space=vmem, size = 0x400, scoped, tag = 'output window, operand 0']
    %6 = vsyncpa [#allocation3], 0
    %s7 = scalar_lea.sflag [#allocation3], 1
    %8 = vsyncpa %s7, 0
    %9 = vsyncpa [#allocation4], 0
    %s10 = scalar_lea.sflag [#allocation4], 1
    %11 = vsyncpa %s10, 0
    loop: start=0, step=1, limit=4
    $region2: #{tpu_custom_call.1} parent=1 // loop_pre_header
      _
    $region3: #{tpu_custom_call.1} parent=1 // loop_header
      %s13 = sphi 0, %s17
      %p14 = scmp.ge.s32.totalorder %s13, 4
      %s23 = sphi 0, %s25
      %s26 = sphi 0, %s23
      %s27 = sphi 0, %s26
      %s43 = sphi 0, %s27
      %s49 = sphi 0, %s51
      %s52 = sphi 0, %s49
      %s53 = sphi 0, %s52
      %s69 = sphi 0, %s53
    $region4: #{tpu_custom_call.1} parent=1 // loop_header_branch
      %16 = sbr.rel (%p14) target = $region8
    $region5: #{tpu_custom_call.1} parent=1 // loop_body
      %s18 = ssub.s32 %s13, 1
      %s19 = ssub.s32 %s13, 2
      %s20 = sadd.s32 %s13, 1
      %s21 = ssub.s32 %s13, %s20
      %p22 = scmp.eq.s32.totalorder %s21, 0
      %s24 = sadd.s32 %s23, 1
      %s25 = scalar_select %p22, %s23, %s24
      %p28 = pneg %p22
      %p29 = scmp.eq.s32.totalorder %s13, 1
      %p30 = por %p28, %p29
      %p31 = scmp.ne.s32.totalorder %s23, %s26
      %p32 = scmp.eq.s32.totalorder %s13, 0
      %p33 = por %p31, %p32
      %p34 = scmp.ne.s32.totalorder %s23, %s26
      %p35 = scmp.eq.s32.totalorder %s18, 1
      %p36 = por %p34, %p35
      %p37 = scmp.ne.s32.totalorder %s26, %s27
      %p38 = scmp.eq.s32.totalorder %s18, 0
      %p39 = por %p37, %p38
      %p40 = scmp.ne.s32.totalorder %s26, %s27
      %p41 = scmp.eq.s32.totalorder %s19, 1
      %p42 = por %p40, %p41
      %p44 = scmp.ne.s32.totalorder %s27, %s43
      %p45 = scmp.eq.s32.totalorder %s19, 0
      %p46 = por %p44, %p45
      %s47 = ssub.s32 %s13, %s20
      %p48 = scmp.eq.s32.totalorder %s47, 0
      %s50 = sadd.s32 %s49, 1
      %s51 = scalar_select %p48, %s49, %s50
      %p54 = pneg %p48
      %p55 = scmp.eq.s32.totalorder %s13, 1
      %p56 = por %p54, %p55
      %p57 = scmp.ne.s32.totalorder %s49, %s52
      %p58 = scmp.eq.s32.totalorder %s13, 0
      %p59 = por %p57, %p58
      %p60 = scmp.ne.s32.totalorder %s49, %s52
      %p61 = scmp.eq.s32.totalorder %s18, 1
      %p62 = por %p60, %p61
      %p63 = scmp.ne.s32.totalorder %s52, %s53
      %p64 = scmp.eq.s32.totalorder %s18, 0
      %p65 = por %p63, %p64
      %p66 = scmp.ne.s32.totalorder %s52, %s53
      %p67 = scmp.eq.s32.totalorder %s19, 1
      %p68 = por %p66, %p67
      %p70 = scmp.ne.s32.totalorder %s53, %s69
      %p71 = scmp.eq.s32.totalorder %s19, 0
      %p72 = por %p70, %p71
      %p73 = scmp.le.s32.totalorder 1, %s13
      %p74 = scmp.lt.s32.totalorder %s13, 3
      %p75 = pnand %p73, %p74
      %p76 = pneg %p75
      // Predicated region
      $region9: #{tpu_custom_call.1} parent=5 // pred_check
        _
      $region10: #{tpu_custom_call.1} parent=5 // pred_check_branch
        %78 = sbr.rel (%p75) target = $region12
      $region11: #{tpu_custom_call.1} parent=5 // pred_region
        %s79 = ssub.s32 %s13, 1
      $region12: #{tpu_custom_call.1} parent=5 // pred_fallthru
        _
      %p80 = scmp.lt.s32.totalorder %s13, 2
      // Predicated region
      $region13: #{tpu_custom_call.1} parent=5 // pred_check
        %p81 = pneg %p80
      $region14: #{tpu_custom_call.1} parent=5 // pred_check_branch
        %83 = sbr.rel (%p81) target = $region16
      $region15: #{tpu_custom_call.1} parent=5 // pred_region
        // Predicated region
        $region17: #{tpu_custom_call.1} parent=15 // pred_check
          %p84 = pneg %p33
        $region18: #{tpu_custom_call.1} parent=15 // pred_check_branch
          %86 = sbr.rel (%p84) target = $region20
        $region19: #{tpu_custom_call.1} parent=15 // pred_region
          %s87 = sand.u32 %s23, 1
          %s88 = scalar_lea.sflag [#allocation3], %s87
          %s89 = sand.u32 %s23, 1
          %s90 = smul.addr %s89, 16
          %s91 = scalar_lea.vmem [#allocation2], %s90
          %s93 = ssub.s32 256, 256
          %94 = vsyncadd %s88, %s93
          %s95 = smul.addr %s13, 128
          %s96 = scalar_lea.hbm %s0, %s95
          %s97 = sshll.u32 %s91, 4
          %s98 = int_to_ptr.vmem [resolvable:$true] %s97
          %103 = dma.hbm_to_vmem [thread:$0]  %s96, 256, %s98, %s88, 256, 128, 8
        $region20: #{tpu_custom_call.1} parent=15 // pred_fallthru
          _
      $region16: #{tpu_custom_call.1} parent=5 // pred_fallthru
        _
      %p104 = scmp.le.s32.totalorder 1, %s13
      %p105 = scmp.lt.s32.totalorder %s13, 3
      %p106 = pnand %p104, %p105
      %p107 = pneg %p106
      // Predicated region
      $region21: #{tpu_custom_call.1} parent=5 // pred_check
        _
      $region22: #{tpu_custom_call.1} parent=5 // pred_check_branch
        %109 = sbr.rel (%p106) target = $region24
      $region23: #{tpu_custom_call.1} parent=5 // pred_region
        %s110 = ssub.s32 %s13, 1
        %s111 = sand.u32 %s26, 1
        %s112 = scalar_lea.sflag [#allocation3], %s111
        %s113 = sand.u32 %s26, 1
        %s114 = smul.addr %s113, 16
        %s115 = scalar_lea.vmem [#allocation2], %s114
        // Predicated region
        $region25: #{tpu_custom_call.1} parent=23 // pred_check
          %p116 = pneg %p39
        $region26: #{tpu_custom_call.1} parent=23 // pred_check_branch
          %118 = sbr.rel (%p116) target = $region28
        $region27: #{tpu_custom_call.1} parent=23 // pred_region
          %119 = dma.done %s112, 256
        $region28: #{tpu_custom_call.1} parent=23 // pred_fallthru
          _
        %s120 = sand.u32 %s26, 1
        %s121 = scalar_lea.sflag [#allocation3], %s120
        %s122 = sand.u32 %s26, 1
        %s123 = smul.addr %s122, 16
        %s124 = scalar_lea.vmem [#allocation2], %s123
        %p125 = pneg %p39
        %p126 = pneg %p36
        %p127 = pneg %p65
        %p128 = pneg %p62
        %s129 = sand.u32 %s52, 1
        %s130 = scalar_lea.sflag [#allocation4], %s129
        %s131 = sand.u32 %s52, 1
        %s132 = scalar_lea.vmem [#allocation5], %s131
        %v133 = vld [vmem:[%s115] sm:$0xff]
        %v134 = vld [vmem:[%s115 + $0x8] sm:$0x1]
        %v135 = vlaneseq
        %v136 = vshrl.u32 %v135, 7
        %v137 = vadd.s32 %v136, 8
        %vm138 = vcmp.eq.s32.totalorder %v136, 0
        %vm139 = vcmp.eq.s32.totalorder %v137, 0
        %v140 = vadd.f32 %v133, 1.0
        %v141 = vadd.f32 %v134, 1.0
        %v142 = vsub.f32 0.0, %v140
        %v143 = vsub.f32 0.0, %v141
        %v144 = vsel %vm138, %v142, %v140
        %v145 = vsel %vm139, %v143, %v141
        %v146 = vmax.f32 %v144, 0.0
        %v147 = vmax.f32 %v145, 0.0
        %v148 = vand.u32 2147483647, %v144
        %v149 = vand.u32 2147483647, %v145
        %v150 = vsub.f32 0.0, %v148
        %v151 = vsub.f32 0.0, %v149
        %v152 = vmul.f32 %v150, 1.442695
        %v153 = vpow.pop %v152
        %v154 = vmul.f32 %v151, 1.442695
        %v155 = vpow.pop %v154
        %v156 = vadd.f32 %v153, 1.0
        %v157 = vlog2.pop %v156
        %v158 = vmul.f32 %v157, 0.6931472
        %v159 = vmul.f32 -0.5, %v153
        %v160 = vadd.f32 %v159, 1.0
        %v161 = vmul.f32 %v160, %v153
        %v162 = vand.u32 2147483647, %v153
        %vm163 = vcmp.lt.f32.partialorder %v162, 0.0004427343
        %v164 = vsel %vm163, %v161, %v158
        %v165 = vadd.f32 %v155, 1.0
        %v166 = vlog2.pop %v165
        %v167 = vmul.f32 %v166, 0.6931472
        %v168 = vmul.f32 -0.5, %v155
        %v169 = vadd.f32 %v168, 1.0
        %v170 = vmul.f32 %v169, %v155
        %v171 = vand.u32 2147483647, %v155
        %vm172 = vcmp.lt.f32.partialorder %v171, 0.0004427343
        %v173 = vsel %vm172, %v170, %v167
        %v174 = vadd.f32 %v146, %v164
        %v175 = vadd.f32 %v147, %v173
        %v176 = vsub.f32 0.0, %v133
        %v177 = vsub.f32 0.0, %v134
        %v178 = vsel %vm138, -inf, %v176
        %v179 = vsel %vm139, -inf, %v177
        %vm180 = vcmask 1040384
        %v181 = vsel %vm180, %v179, -inf
        %v182 = vmax.f32 %v178, %v181
        %v183 = vrot.slane %v182, 4
        %v184 = vmax.f32 %v182, %v183
        %v185 = vrot.slane %v184, 2
        %v186 = vmax.f32 %v184, %v185
        %v187 = vrot.slane %v186, 1
        %v188 = vmax.f32 %v186, %v187
        %v189 = vsub.f32 %v178, %v188
        %v190 = vsub.f32 %v179, %v188
        %v191 = vmul.f32 %v189, 1.442695
        %v192 = vpow.pop %v191
        %v193 = vmul.f32 %v190, 1.442695
        %v194 = vpow.pop %v193
        %v195 = vsel %vm138, 0.0, %v192
        %v196 = vsel %vm139, 0.0, %v194
        %v197 = vsel %vm180, %v196, 0.0
        %v198 = vadd.f32 %v195, %v197
        %v199 = vrot.slane %v198, 4
        %v200 = vadd.f32 %v198, %v199
        %v201 = vrot.slane %v200, 2
        %v202 = vadd.f32 %v200, %v201
        %v203 = vrot.slane %v202, 1
        %v204 = vadd.f32 %v202, %v203
        %v205 = vmul.f32 %v195, %v174
        %v206 = vmul.f32 %v196, %v175
        %v207 = vsel %vm180, %v206, 0.0
        %v208 = vadd.f32 %v205, %v207
        %v209 = vrot.slane %v208, 4
        %v210 = vadd.f32 %v208, %v209
        %v211 = vrot.slane %v210, 2
        %v212 = vadd.f32 %v210, %v211
        %v213 = vrot.slane %v212, 1
        %v214 = vadd.f32 %v212, %v213
        %v215 = vrcp.pop %v204
        %v216 = vmul.f32 %v204, %v215
        %v217 = vsub.f32 2.0, %v216
        %v218 = vmul.f32 %v215, %v217
        %v219 = vmul.f32 %v214, %v218
        %v220 = vmul.f32 %v174, 0.5
        %v221 = vmul.f32 %v219, 0.5
        %v222 = vadd.f32 %v220, %v221
        %223 = vst [vmem:[%s132] sm:$0x1] %v222
        %s224 = sand.u32 %s52, 1
        %s225 = scalar_lea.sflag [#allocation4], %s224
        %s226 = sand.u32 %s52, 1
        %s227 = scalar_lea.vmem [#allocation5], %s226
        // Predicated region
        $region29: #{tpu_custom_call.1} parent=23 // pred_check
          %p228 = pneg %p62
        $region30: #{tpu_custom_call.1} parent=23 // pred_check_branch
          %230 = sbr.rel (%p228) target = $region32
        $region31: #{tpu_custom_call.1} parent=23 // pred_region
          %s232 = ssub.s32 16, 16
          %233 = vsyncadd %s225, %s232
          %s234 = smul.addr %s18, 16
          %s235 = scalar_lea.hbm %s1, %s234
          %s237 = sshll.u32 %s227, 4
          %s238 = int_to_ptr.vmem [resolvable:$true] %s237
          %240 = dma.vmem_to_hbm [thread:$0]  %s238, 16, %s235, %s225
        $region32: #{tpu_custom_call.1} parent=23 // pred_fallthru
          _
      $region24: #{tpu_custom_call.1} parent=5 // pred_fallthru
        _
      %p241 = scmp.le.s32.totalorder 2, %s13
      // Predicated region
      $region33: #{tpu_custom_call.1} parent=5 // pred_check
        %p242 = pneg %p241
      $region34: #{tpu_custom_call.1} parent=5 // pred_check_branch
        %244 = sbr.rel (%p242) target = $region36
      $region35: #{tpu_custom_call.1} parent=5 // pred_region
        %s245 = ssub.s32 %s13, 2
        // Predicated region
        $region37: #{tpu_custom_call.1} parent=35 // pred_check
          %p246 = pneg %p68
        $region38: #{tpu_custom_call.1} parent=35 // pred_check_branch
          %248 = sbr.rel (%p246) target = $region40
        $region39: #{tpu_custom_call.1} parent=35 // pred_region
          %s249 = sand.u32 %s53, 1
          %s250 = scalar_lea.sflag [#allocation4], %s249
          %s251 = sand.u32 %s53, 1
          %s252 = scalar_lea.vmem [#allocation5], %s251
          %253 = dma.done %s250, 16
        $region40: #{tpu_custom_call.1} parent=35 // pred_fallthru
          _
      $region36: #{tpu_custom_call.1} parent=5 // pred_fallthru
        _
    $region6: #{tpu_custom_call.1} parent=1 // loop_footer
      %s17 = sadd.s32 1, %s13
    $region7: #{tpu_custom_call.1} parent=1 // loop_footer_branch
      %12 = sbr.rel target = $region3
    $region8: #{tpu_custom_call.1} parent=1 // loop_exit
      _
    %254 = vsyncpa [#allocation3], 1
    %s255 = scalar_lea.sflag [#allocation3], 1
    %256 = vsyncpa %s255, 1
    %257 = vsyncpa [#allocation4], 1
    %s258 = scalar_lea.sflag [#allocation4], 1
    %259 = vsyncpa %s258, 1

</llo_original>
